<compile_context>
chip_gen: v6e
topology: v6e:2x2x1
jax: 0.10.0
libtpu: 0.0.40
codegen_flags: <defaults>
</compile_context>

<pallas_src>
import functools

import jax
import jax.numpy as jnp
from jax.experimental import pallas as pl
from jax.experimental.pallas import tpu as pltpu


def _dice_sums_kernel(score_ref, target_ref, out_ref, *, n_classes, softmax):
    """Per-spatial-chunk partial sums for all classes.

    score_ref : (N, C, TH, W)  scores (or logits if softmax=True), chunk k
    target_ref: (N, TH, W)     int32 labels, chunk k
    out_ref   : (1, 8, 128)    row 0 lane c = intersect_c,
                               row 1 lane c = y_sum_c,
                               row 2 lane c = z_sum_c
    """
    labels = target_ref[...]                                   # (N, TH, W) int32

    if softmax:
        # Full class axis is resident in the block -> softmax fuses locally.
        x = score_ref[...].astype(jnp.float32)                 # (N, C, TH, W)
        m = jnp.max(x, axis=1, keepdims=True)
        e = jnp.exp(x - m)
        denom = jnp.sum(e, axis=1, keepdims=True)

        def class_score(c):
            return e[:, c] / denom[:, 0]                       # (N, TH, W) f32
    else:

        def class_score(c):
            return score_ref[:, c].astype(jnp.float32)         # (N, TH, W) f32

    row = jax.lax.broadcasted_iota(jnp.int32, (8, 128), 0)
    lane = jax.lax.broadcasted_iota(jnp.int32, (8, 128), 1)

    upd = jnp.zeros((8, 128), jnp.float32)
    for c in range(n_classes):                                 # C is small & static
        sc = class_score(c)
        eq = labels == c                                       # int one-hot compare
        intersect = jnp.sum(jnp.where(eq, sc, 0.0))
        y_sum = jnp.sum(eq.astype(jnp.float32))                # onehot^2 == onehot
        z_sum = jnp.sum(sc * sc)
        sel = lane == c
        upd = (upd
               + jnp.where((row == 0) & sel, intersect, 0.0)
               + jnp.where((row == 1) & sel, y_sum, 0.0)
               + jnp.where((row == 2) & sel, z_sum, 0.0))

    out_ref[...] = upd[None]


def _pick_block_h(N, C, H, W, score_itemsize, softmax, budget_bytes=8 << 20):
    """Largest legal tile height: divides H, is a multiple of 8 (or == H), and
    keeps the double-buffered input blocks plus the f32 working set of one
    chunk inside a conservative budget (default scoped VMEM is 16 MiB on v5e)."""
    w_pad = -(-W // 128) * 128                                  # lanes pad to 128
    work = (2 * C if softmax else C) * 4                        # f32 intermediates
    bytes_per_row = N * w_pad * (2 * C * max(score_itemsize, 1) + 2 * 4 + work)
    cands = [d for d in range(8, H + 1, 8) if H % d == 0]
    if not cands:
        return H                                                # full H is always legal
    fitting = [d for d in cands if d * bytes_per_row <= budget_bytes]
    return fitting[-1] if fitting else cands[0]


@functools.partial(jax.jit, static_argnames=("n_classes", "softmax", "block_h"))
def dice_loss(inputs, target, n_classes, weight=None, softmax=False, block_h=None):
    """inputs: (N, C, H, W) float scores/logits; target: (N, H, W) integer labels."""
    N, C, H, W = inputs.shape
    assert C == n_classes, f"predict C={C} & n_classes={n_classes} do not match"
    # TODO(synk): lanes hold one class each; >128 classes needs a second lane group.
    assert n_classes <= 128, "kernel packs per-class sums into 128 lanes"

    target = target.astype(jnp.int32)

    th = (_pick_block_h(N, C, H, W, inputs.dtype.itemsize, softmax)
          if block_h is None else int(block_h))
    assert H % th == 0 and (th % 8 == 0 or th == H), f"bad block_h={th} for H={H}"
    kh = H // th

    kernel = functools.partial(_dice_sums_kernel, n_classes=C, softmax=softmax)

    partials = pl.pallas_call(
        kernel,
        out_shape=jax.ShapeDtypeStruct((kh, 8, 128), jnp.float32),
        grid=(kh,),
        in_specs=[
            # all C classes of one spatial chunk, straight out of NCHW (no repack)
            pl.BlockSpec((N, C, th, W), lambda k: (0, 0, k, 0)),
            # int32 labels for the same spatial chunk (read exactly once total)
            pl.BlockSpec((N, th, W), lambda k: (0, k, 0)),
        ],
        out_specs=pl.BlockSpec((1, 8, 128), lambda k: (k, 0, 0)),
        compiler_params=pltpu.CompilerParams(
            dimension_semantics=("parallel",),
        ),
    )(inputs, target)

    sums = jnp.sum(partials, axis=0)              # (8, 128), tiny
    intersect = sums[0, :C]
    y_sum = sums[1, :C]
    z_sum = sums[2, :C]

    smooth = jnp.float32(1e-5)
    dice = 1.0 - (2.0 * intersect + smooth) / (z_sum + y_sum + smooth)

    if weight is None:
        weight = jnp.ones((n_classes,), jnp.float32)
    else:
        weight = jnp.asarray(weight, jnp.float32)
    return jnp.sum(dice * weight) / n_classes


def _dice_loss_ref(inputs, target, n_classes, weight=None, softmax=False):
    """Pure-JAX reference matching the PyTorch module semantics."""
    if softmax:
        inputs = jax.nn.softmax(inputs, axis=1)
    if weight is None:
        weight = [1.0] * n_classes
    smooth = 1e-5
    loss = 0.0
    for i in range(n_classes):
        s = inputs[:, i].astype(jnp.float32)
        t = (target == i).astype(jnp.float32)
        intersect = jnp.sum(s * t)
        y_sum = jnp.sum(t * t)
        z_sum = jnp.sum(s * s)
        dice = 1.0 - (2.0 * intersect + smooth) / (z_sum + y_sum + smooth)
        loss = loss + dice * weight[i]
    return loss / n_classes


if __name__ == "__main__":
    key = jax.random.PRNGKey(0)
    k1, k2 = jax.random.split(key)

    N, C, H, W = 2, 4, 16, 16
    # Scores in [0, 1) (as if already post-softmax/sigmoid), labels in [0, C).
    inputs = jax.random.uniform(k1, (N, C, H, W), dtype=jnp.float32)
    target = jax.random.randint(k2, (N, H, W), 0, C, dtype=jnp.int32)

    ref = _dice_loss_ref(inputs, target, C, softmax=False)

    # 1) Default tiling (single spatial chunk).
    loss = jax.block_until_ready(dice_loss(inputs, target, n_classes=C))
    assert jnp.allclose(loss, ref, rtol=1e-5, atol=1e-6), (loss, ref)

    # 2) Force a multi-chunk grid (kh = 2) to exercise the per-chunk partials path.
    loss2 = jax.block_until_ready(dice_loss(inputs, target, n_classes=C, block_h=8))
    assert jnp.allclose(loss2, ref, rtol=1e-5, atol=1e-6), (loss2, ref)

    # 3) Fused-softmax + class-weights path.
    w = [1.0, 2.0, 0.5, 1.5]
    loss3 = jax.block_until_ready(
        dice_loss(inputs, target, n_classes=C,
                  weight=jnp.asarray(w, jnp.float32), softmax=True, block_h=8))
    ref3 = _dice_loss_ref(inputs, target, C, weight=w, softmax=True)
    assert jnp.allclose(loss3, ref3, rtol=1e-5, atol=1e-6), (loss3, ref3)

    print("KERNEL_OK")
</pallas_src>

<mosaic_0001>
module attributes {stable_mosaic.version = 11 : i64} {
  func.func @_dice_sums_kernel(%arg0: i32, %arg1: memref<2x4x16x16xf32, #tpu.memory_space<vmem>>, %arg2: memref<2x16x16xi32, #tpu.memory_space<vmem>>, %arg3: memref<1x8x128xf32, #tpu.memory_space<vmem>>) attributes {dimension_semantics = [#tpu.dimension_semantics<parallel>], iteration_bounds = array<i64: 1>, scalar_prefetch = 0 : i64, scratch_operands = 0 : i64, tpu.core_type = #tpu.core_type<tc>, window_params = [{transform_indices = @transform_0, window_bounds = array<i64: 2, 4, 16, 16>}, {transform_indices = @transform_1, window_bounds = array<i64: 2, 16, 16>}, {transform_indices = @transform_2, window_bounds = array<i64: 1, 8, 128>}]} {
    %c0 = arith.constant 0 : index
    %c0_0 = arith.constant 0 : index
    %c0_1 = arith.constant 0 : index
    %0 = vector.load %arg2[%c0, %c0_0, %c0_1] : memref<2x16x16xi32, #tpu.memory_space<vmem>>, vector<2x16x16xi32>
    %1 = tpu.iota {dimensions = array<i32: 0>} : vector<8x128xi32>
    %2 = tpu.iota {dimensions = array<i32: 1>} : vector<8x128xi32>
    %cst = arith.constant 0.000000e+00 : f32
    %3 = vector.broadcast %cst : f32 to vector<8x128xf32>
    %c0_2 = arith.constant 0 : index
    %c0_3 = arith.constant 0 : index
    %c0_4 = arith.constant 0 : index
    %c0_5 = arith.constant 0 : index
    %4 = vector.load %arg1[%c0_2, %c0_3, %c0_4, %c0_5] : memref<2x4x16x16xf32, #tpu.memory_space<vmem>>, vector<2x1x16x16xf32>
    %5 = vector.shape_cast %4 : vector<2x1x16x16xf32> to vector<2x16x16xf32>
    %c0_i32 = arith.constant 0 : i32
    %6 = vector.broadcast %c0_i32 : i32 to vector<2x16x16xi32>
    %7 = arith.cmpi eq, %0, %6 : vector<2x16x16xi32>
    %cst_6 = arith.constant 0.000000e+00 : f32
    %8 = vector.broadcast %cst_6 : f32 to vector<2x16x16xf32>
    %9 = arith.select %7, %5, %8 : vector<2x16x16xi1>, vector<2x16x16xf32>
    %10 = vector.shape_cast %9 : vector<2x16x16xf32> to vector<1x2x16x16xf32>
    %cst_7 = arith.constant dense<0.000000e+00> : vector<1xf32>
    %11 = vector.multi_reduction <add>, %10, %cst_7 [1, 2, 3] : vector<1x2x16x16xf32> to vector<1xf32>
    %12 = vector.shape_cast %11 : vector<1xf32> to vector<1x1x1x1xf32>
    %13 = vector.extract %12[0, 0, 0, 0] : f32 from vector<1x1x1x1xf32>
    %14 = arith.extui %7 : vector<2x16x16xi1> to vector<2x16x16xi32>
    %15 = arith.sitofp %14 : vector<2x16x16xi32> to vector<2x16x16xf32>
    %16 = vector.shape_cast %15 : vector<2x16x16xf32> to vector<1x2x16x16xf32>
    %cst_8 = arith.constant dense<0.000000e+00> : vector<1xf32>
    %17 = vector.multi_reduction <add>, %16, %cst_8 [1, 2, 3] : vector<1x2x16x16xf32> to vector<1xf32>
    %18 = vector.shape_cast %17 : vector<1xf32> to vector<1x1x1x1xf32>
    %19 = vector.extract %18[0, 0, 0, 0] : f32 from vector<1x1x1x1xf32>
    %20 = arith.mulf %5, %5 : vector<2x16x16xf32>
    %21 = vector.shape_cast %20 : vector<2x16x16xf32> to vector<1x2x16x16xf32>
    %cst_9 = arith.constant dense<0.000000e+00> : vector<1xf32>
    %22 = vector.multi_reduction <add>, %21, %cst_9 [1, 2, 3] : vector<1x2x16x16xf32> to vector<1xf32>
    %23 = vector.shape_cast %22 : vector<1xf32> to vector<1x1x1x1xf32>
    %24 = vector.extract %23[0, 0, 0, 0] : f32 from vector<1x1x1x1xf32>
    %c0_i32_10 = arith.constant 0 : i32
    %25 = vector.broadcast %c0_i32_10 : i32 to vector<8x128xi32>
    %26 = arith.cmpi eq, %2, %25 : vector<8x128xi32>
    %c0_i32_11 = arith.constant 0 : i32
    %27 = vector.broadcast %c0_i32_11 : i32 to vector<8x128xi32>
    %28 = arith.cmpi eq, %1, %27 : vector<8x128xi32>
    %29 = arith.andi %28, %26 : vector<8x128xi1>
    %cst_12 = arith.constant 0.000000e+00 : f32
    %30 = vector.broadcast %13 : f32 to vector<8x128xf32>
    %31 = vector.broadcast %cst_12 : f32 to vector<8x128xf32>
    %32 = arith.select %29, %30, %31 : vector<8x128xi1>, vector<8x128xf32>
    %33 = arith.addf %3, %32 : vector<8x128xf32>
    %c1_i32 = arith.constant 1 : i32
    %34 = vector.broadcast %c1_i32 : i32 to vector<8x128xi32>
    %35 = arith.cmpi eq, %1, %34 : vector<8x128xi32>
    %36 = arith.andi %35, %26 : vector<8x128xi1>
    %cst_13 = arith.constant 0.000000e+00 : f32
    %37 = vector.broadcast %19 : f32 to vector<8x128xf32>
    %38 = vector.broadcast %cst_13 : f32 to vector<8x128xf32>
    %39 = arith.select %36, %37, %38 : vector<8x128xi1>, vector<8x128xf32>
    %40 = arith.addf %33, %39 : vector<8x128xf32>
    %c2_i32 = arith.constant 2 : i32
    %41 = vector.broadcast %c2_i32 : i32 to vector<8x128xi32>
    %42 = arith.cmpi eq, %1, %41 : vector<8x128xi32>
    %43 = arith.andi %42, %26 : vector<8x128xi1>
    %cst_14 = arith.constant 0.000000e+00 : f32
    %44 = vector.broadcast %24 : f32 to vector<8x128xf32>
    %45 = vector.broadcast %cst_14 : f32 to vector<8x128xf32>
    %46 = arith.select %43, %44, %45 : vector<8x128xi1>, vector<8x128xf32>
    %47 = arith.addf %40, %46 : vector<8x128xf32>
    %c0_15 = arith.constant 0 : index
    %c1 = arith.constant 1 : index
    %c0_16 = arith.constant 0 : index
    %c0_17 = arith.constant 0 : index
    %48 = vector.load %arg1[%c0_15, %c1, %c0_16, %c0_17] : memref<2x4x16x16xf32, #tpu.memory_space<vmem>>, vector<2x1x16x16xf32>
    %49 = vector.shape_cast %48 : vector<2x1x16x16xf32> to vector<2x16x16xf32>
    %c1_i32_18 = arith.constant 1 : i32
    %50 = vector.broadcast %c1_i32_18 : i32 to vector<2x16x16xi32>
    %51 = arith.cmpi eq, %0, %50 : vector<2x16x16xi32>
    %cst_19 = arith.constant 0.000000e+00 : f32
    %52 = vector.broadcast %cst_19 : f32 to vector<2x16x16xf32>
    %53 = arith.select %51, %49, %52 : vector<2x16x16xi1>, vector<2x16x16xf32>
    %54 = vector.shape_cast %53 : vector<2x16x16xf32> to vector<1x2x16x16xf32>
    %cst_20 = arith.constant dense<0.000000e+00> : vector<1xf32>
    %55 = vector.multi_reduction <add>, %54, %cst_20 [1, 2, 3] : vector<1x2x16x16xf32> to vector<1xf32>
    %56 = vector.shape_cast %55 : vector<1xf32> to vector<1x1x1x1xf32>
    %57 = vector.extract %56[0, 0, 0, 0] : f32 from vector<1x1x1x1xf32>
    %58 = arith.extui %51 : vector<2x16x16xi1> to vector<2x16x16xi32>
    %59 = arith.sitofp %58 : vector<2x16x16xi32> to vector<2x16x16xf32>
    %60 = vector.shape_cast %59 : vector<2x16x16xf32> to vector<1x2x16x16xf32>
    %cst_21 = arith.constant dense<0.000000e+00> : vector<1xf32>
    %61 = vector.multi_reduction <add>, %60, %cst_21 [1, 2, 3] : vector<1x2x16x16xf32> to vector<1xf32>
    %62 = vector.shape_cast %61 : vector<1xf32> to vector<1x1x1x1xf32>
    %63 = vector.extract %62[0, 0, 0, 0] : f32 from vector<1x1x1x1xf32>
    %64 = arith.mulf %49, %49 : vector<2x16x16xf32>
    %65 = vector.shape_cast %64 : vector<2x16x16xf32> to vector<1x2x16x16xf32>
    %cst_22 = arith.constant dense<0.000000e+00> : vector<1xf32>
    %66 = vector.multi_reduction <add>, %65, %cst_22 [1, 2, 3] : vector<1x2x16x16xf32> to vector<1xf32>
    %67 = vector.shape_cast %66 : vector<1xf32> to vector<1x1x1x1xf32>
    %68 = vector.extract %67[0, 0, 0, 0] : f32 from vector<1x1x1x1xf32>
    %c1_i32_23 = arith.constant 1 : i32
    %69 = vector.broadcast %c1_i32_23 : i32 to vector<8x128xi32>
    %70 = arith.cmpi eq, %2, %69 : vector<8x128xi32>
    %c0_i32_24 = arith.constant 0 : i32
    %71 = vector.broadcast %c0_i32_24 : i32 to vector<8x128xi32>
    %72 = arith.cmpi eq, %1, %71 : vector<8x128xi32>
    %73 = arith.andi %72, %70 : vector<8x128xi1>
    %cst_25 = arith.constant 0.000000e+00 : f32
    %74 = vector.broadcast %57 : f32 to vector<8x128xf32>
    %75 = vector.broadcast %cst_25 : f32 to vector<8x128xf32>
    %76 = arith.select %73, %74, %75 : vector<8x128xi1>, vector<8x128xf32>
    %77 = arith.addf %47, %76 : vector<8x128xf32>
    %c1_i32_26 = arith.constant 1 : i32
    %78 = vector.broadcast %c1_i32_26 : i32 to vector<8x128xi32>
    %79 = arith.cmpi eq, %1, %78 : vector<8x128xi32>
    %80 = arith.andi %79, %70 : vector<8x128xi1>
    %cst_27 = arith.constant 0.000000e+00 : f32
    %81 = vector.broadcast %63 : f32 to vector<8x128xf32>
    %82 = vector.broadcast %cst_27 : f32 to vector<8x128xf32>
    %83 = arith.select %80, %81, %82 : vector<8x128xi1>, vector<8x128xf32>
    %84 = arith.addf %77, %83 : vector<8x128xf32>
    %c2_i32_28 = arith.constant 2 : i32
    %85 = vector.broadcast %c2_i32_28 : i32 to vector<8x128xi32>
    %86 = arith.cmpi eq, %1, %85 : vector<8x128xi32>
    %87 = arith.andi %86, %70 : vector<8x128xi1>
    %cst_29 = arith.constant 0.000000e+00 : f32
    %88 = vector.broadcast %68 : f32 to vector<8x128xf32>
    %89 = vector.broadcast %cst_29 : f32 to vector<8x128xf32>
    %90 = arith.select %87, %88, %89 : vector<8x128xi1>, vector<8x128xf32>
    %91 = arith.addf %84, %90 : vector<8x128xf32>
    %c0_30 = arith.constant 0 : index
    %c2 = arith.constant 2 : index
    %c0_31 = arith.constant 0 : index
    %c0_32 = arith.constant 0 : index
    %92 = vector.load %arg1[%c0_30, %c2, %c0_31, %c0_32] : memref<2x4x16x16xf32, #tpu.memory_space<vmem>>, vector<2x1x16x16xf32>
    %93 = vector.shape_cast %92 : vector<2x1x16x16xf32> to vector<2x16x16xf32>
    %c2_i32_33 = arith.constant 2 : i32
    %94 = vector.broadcast %c2_i32_33 : i32 to vector<2x16x16xi32>
    %95 = arith.cmpi eq, %0, %94 : vector<2x16x16xi32>
    %cst_34 = arith.constant 0.000000e+00 : f32
    %96 = vector.broadcast %cst_34 : f32 to vector<2x16x16xf32>
    %97 = arith.select %95, %93, %96 : vector<2x16x16xi1>, vector<2x16x16xf32>
    %98 = vector.shape_cast %97 : vector<2x16x16xf32> to vector<1x2x16x16xf32>
    %cst_35 = arith.constant dense<0.000000e+00> : vector<1xf32>
    %99 = vector.multi_reduction <add>, %98, %cst_35 [1, 2, 3] : vector<1x2x16x16xf32> to vector<1xf32>
    %100 = vector.shape_cast %99 : vector<1xf32> to vector<1x1x1x1xf32>
    %101 = vector.extract %100[0, 0, 0, 0] : f32 from vector<1x1x1x1xf32>
    %102 = arith.extui %95 : vector<2x16x16xi1> to vector<2x16x16xi32>
    %103 = arith.sitofp %102 : vector<2x16x16xi32> to vector<2x16x16xf32>
    %104 = vector.shape_cast %103 : vector<2x16x16xf32> to vector<1x2x16x16xf32>
    %cst_36 = arith.constant dense<0.000000e+00> : vector<1xf32>
    %105 = vector.multi_reduction <add>, %104, %cst_36 [1, 2, 3] : vector<1x2x16x16xf32> to vector<1xf32>
    %106 = vector.shape_cast %105 : vector<1xf32> to vector<1x1x1x1xf32>
    %107 = vector.extract %106[0, 0, 0, 0] : f32 from vector<1x1x1x1xf32>
    %108 = arith.mulf %93, %93 : vector<2x16x16xf32>
    %109 = vector.shape_cast %108 : vector<2x16x16xf32> to vector<1x2x16x16xf32>
    %cst_37 = arith.constant dense<0.000000e+00> : vector<1xf32>
    %110 = vector.multi_reduction <add>, %109, %cst_37 [1, 2, 3] : vector<1x2x16x16xf32> to vector<1xf32>
    %111 = vector.shape_cast %110 : vector<1xf32> to vector<1x1x1x1xf32>
    %112 = vector.extract %111[0, 0, 0, 0] : f32 from vector<1x1x1x1xf32>
    %c2_i32_38 = arith.constant 2 : i32
    %113 = vector.broadcast %c2_i32_38 : i32 to vector<8x128xi32>
    %114 = arith.cmpi eq, %2, %113 : vector<8x128xi32>
    %c0_i32_39 = arith.constant 0 : i32
    %115 = vector.broadcast %c0_i32_39 : i32 to vector<8x128xi32>
    %116 = arith.cmpi eq, %1, %115 : vector<8x128xi32>
    %117 = arith.andi %116, %114 : vector<8x128xi1>
    %cst_40 = arith.constant 0.000000e+00 : f32
    %118 = vector.broadcast %101 : f32 to vector<8x128xf32>
    %119 = vector.broadcast %cst_40 : f32 to vector<8x128xf32>
    %120 = arith.select %117, %118, %119 : vector<8x128xi1>, vector<8x128xf32>
    %121 = arith.addf %91, %120 : vector<8x128xf32>
    %c1_i32_41 = arith.constant 1 : i32
    %122 = vector.broadcast %c1_i32_41 : i32 to vector<8x128xi32>
    %123 = arith.cmpi eq, %1, %122 : vector<8x128xi32>
    %124 = arith.andi %123, %114 : vector<8x128xi1>
    %cst_42 = arith.constant 0.000000e+00 : f32
    %125 = vector.broadcast %107 : f32 to vector<8x128xf32>
    %126 = vector.broadcast %cst_42 : f32 to vector<8x128xf32>
    %127 = arith.select %124, %125, %126 : vector<8x128xi1>, vector<8x128xf32>
    %128 = arith.addf %121, %127 : vector<8x128xf32>
    %c2_i32_43 = arith.constant 2 : i32
    %129 = vector.broadcast %c2_i32_43 : i32 to vector<8x128xi32>
    %130 = arith.cmpi eq, %1, %129 : vector<8x128xi32>
    %131 = arith.andi %130, %114 : vector<8x128xi1>
    %cst_44 = arith.constant 0.000000e+00 : f32
    %132 = vector.broadcast %112 : f32 to vector<8x128xf32>
    %133 = vector.broadcast %cst_44 : f32 to vector<8x128xf32>
    %134 = arith.select %131, %132, %133 : vector<8x128xi1>, vector<8x128xf32>
    %135 = arith.addf %128, %134 : vector<8x128xf32>
    %c0_45 = arith.constant 0 : index
    %c3 = arith.constant 3 : index
    %c0_46 = arith.constant 0 : index
    %c0_47 = arith.constant 0 : index
    %136 = vector.load %arg1[%c0_45, %c3, %c0_46, %c0_47] : memref<2x4x16x16xf32, #tpu.memory_space<vmem>>, vector<2x1x16x16xf32>
    %137 = vector.shape_cast %136 : vector<2x1x16x16xf32> to vector<2x16x16xf32>
    %c3_i32 = arith.constant 3 : i32
    %138 = vector.broadcast %c3_i32 : i32 to vector<2x16x16xi32>
    %139 = arith.cmpi eq, %0, %138 : vector<2x16x16xi32>
    %cst_48 = arith.constant 0.000000e+00 : f32
    %140 = vector.broadcast %cst_48 : f32 to vector<2x16x16xf32>
    %141 = arith.select %139, %137, %140 : vector<2x16x16xi1>, vector<2x16x16xf32>
    %142 = vector.shape_cast %141 : vector<2x16x16xf32> to vector<1x2x16x16xf32>
    %cst_49 = arith.constant dense<0.000000e+00> : vector<1xf32>
    %143 = vector.multi_reduction <add>, %142, %cst_49 [1, 2, 3] : vector<1x2x16x16xf32> to vector<1xf32>
    %144 = vector.shape_cast %143 : vector<1xf32> to vector<1x1x1x1xf32>
    %145 = vector.extract %144[0, 0, 0, 0] : f32 from vector<1x1x1x1xf32>
    %146 = arith.extui %139 : vector<2x16x16xi1> to vector<2x16x16xi32>
    %147 = arith.sitofp %146 : vector<2x16x16xi32> to vector<2x16x16xf32>
    %148 = vector.shape_cast %147 : vector<2x16x16xf32> to vector<1x2x16x16xf32>
    %cst_50 = arith.constant dense<0.000000e+00> : vector<1xf32>
    %149 = vector.multi_reduction <add>, %148, %cst_50 [1, 2, 3] : vector<1x2x16x16xf32> to vector<1xf32>
    %150 = vector.shape_cast %149 : vector<1xf32> to vector<1x1x1x1xf32>
    %151 = vector.extract %150[0, 0, 0, 0] : f32 from vector<1x1x1x1xf32>
    %152 = arith.mulf %137, %137 : vector<2x16x16xf32>
    %153 = vector.shape_cast %152 : vector<2x16x16xf32> to vector<1x2x16x16xf32>
    %cst_51 = arith.constant dense<0.000000e+00> : vector<1xf32>
    %154 = vector.multi_reduction <add>, %153, %cst_51 [1, 2, 3] : vector<1x2x16x16xf32> to vector<1xf32>
    %155 = vector.shape_cast %154 : vector<1xf32> to vector<1x1x1x1xf32>
    %156 = vector.extract %155[0, 0, 0, 0] : f32 from vector<1x1x1x1xf32>
    %c3_i32_52 = arith.constant 3 : i32
    %157 = vector.broadcast %c3_i32_52 : i32 to vector<8x128xi32>
    %158 = arith.cmpi eq, %2, %157 : vector<8x128xi32>
    %c0_i32_53 = arith.constant 0 : i32
    %159 = vector.broadcast %c0_i32_53 : i32 to vector<8x128xi32>
    %160 = arith.cmpi eq, %1, %159 : vector<8x128xi32>
    %161 = arith.andi %160, %158 : vector<8x128xi1>
    %cst_54 = arith.constant 0.000000e+00 : f32
    %162 = vector.broadcast %145 : f32 to vector<8x128xf32>
    %163 = vector.broadcast %cst_54 : f32 to vector<8x128xf32>
    %164 = arith.select %161, %162, %163 : vector<8x128xi1>, vector<8x128xf32>
    %165 = arith.addf %135, %164 : vector<8x128xf32>
    %c1_i32_55 = arith.constant 1 : i32
    %166 = vector.broadcast %c1_i32_55 : i32 to vector<8x128xi32>
    %167 = arith.cmpi eq, %1, %166 : vector<8x128xi32>
    %168 = arith.andi %167, %158 : vector<8x128xi1>
    %cst_56 = arith.constant 0.000000e+00 : f32
    %169 = vector.broadcast %151 : f32 to vector<8x128xf32>
    %170 = vector.broadcast %cst_56 : f32 to vector<8x128xf32>
    %171 = arith.select %168, %169, %170 : vector<8x128xi1>, vector<8x128xf32>
    %172 = arith.addf %165, %171 : vector<8x128xf32>
    %c2_i32_57 = arith.constant 2 : i32
    %173 = vector.broadcast %c2_i32_57 : i32 to vector<8x128xi32>
    %174 = arith.cmpi eq, %1, %173 : vector<8x128xi32>
    %175 = arith.andi %174, %158 : vector<8x128xi1>
    %cst_58 = arith.constant 0.000000e+00 : f32
    %176 = vector.broadcast %156 : f32 to vector<8x128xf32>
    %177 = vector.broadcast %cst_58 : f32 to vector<8x128xf32>
    %178 = arith.select %175, %176, %177 : vector<8x128xi1>, vector<8x128xf32>
    %179 = arith.addf %172, %178 : vector<8x128xf32>
    %180 = vector.shape_cast %179 : vector<8x128xf32> to vector<1x8x128xf32>
    %c0_59 = arith.constant 0 : index
    %c0_60 = arith.constant 0 : index
    %c0_61 = arith.constant 0 : index
    %181 = vector.load %arg3[%c0_59, %c0_60, %c0_61] : memref<1x8x128xf32, #tpu.memory_space<vmem>>, vector<1x8x128xf32>
    tpu.vector_store %arg3[%c0_59, %c0_60, %c0_61], %180 {strides = array<i32>} : memref<1x8x128xf32, #tpu.memory_space<vmem>>, vector<1x8x128xf32>,
    return
  }
  func.func @transform_0(%arg0: i32) -> (i32, i32, i32, i32) {
    %c0_i32 = arith.constant 0 : i32
    %c0_i32_0 = arith.constant 0 : i32
    %c0_i32_1 = arith.constant 0 : i32
    %c0_i32_2 = arith.constant 0 : i32
    return %c0_i32, %c0_i32_0, %arg0, %c0_i32_1 : i32, i32, i32, i32
  }
  func.func @transform_1(%arg0: i32) -> (i32, i32, i32) {
    %c0_i32 = arith.constant 0 : i32
    %c0_i32_0 = arith.constant 0 : i32
    %c0_i32_1 = arith.constant 0 : i32
    return %c0_i32, %arg0, %c0_i32_0 : i32, i32, i32
  }
  func.func @transform_2(%arg0: i32) -> (i32, i32, i32) {
    %c0_i32 = arith.constant 0 : i32
    %c0_i32_0 = arith.constant 0 : i32
    %c0_i32_1 = arith.constant 0 : i32
    return %arg0, %c0_i32, %c0_i32_0 : i32, i32, i32
  }
}

</mosaic_0001>

<llo_original>
// kernel: dice_loss.1
$region0: #{dice_loss.1}
  #allocation0 [shape = 'u32[]', space=smem, size = 0x4, offset = 0x4, fixed_abs, tag = 'smem constant byte address 0x4 - core index']
  #allocation1 [shape = 'u32[144,128]{1,0:T(1,128)}', space=vmem, size = 0x12000, scoped, tag = 'internal scratch']
  %s0 = inlined_call_operand.hbm [shape: f32[2,4,16,16], index: 0, kind: input, shape index: {}]
  %s1 = inlined_call_operand.hbm [shape: s32[2,16,16], index: 1, kind: input, shape index: {}]
  %s2 = inlined_call_operand.vmem [shape: f32[1,8,128], index: 2, kind: output, shape index: {}]
  %s3 = sld [smem:[#allocation0]]
  $region26: #{dice_loss.1} parent=0
    _
  %s5 = ssub.s32 1, %s3
  %s6 = scalar_select 0, %s5, %s3
  $region1: #{dice_loss.1} parent=0
    #allocation2 [shape = 'u8[65536]{0}', space=vmem, size = 0x10000, scoped, tag = 'input window, operand 0, single buffered']
    #allocation3 [shape = 's32[1]{0}', space=sflag, size = 0x4, scoped, tag = 'scoped memory for dice_loss.1']
    #allocation4 [shape = 'u8[16384]{0}', space=vmem, size = 0x4000, scoped, tag = 'input window, operand 1, single buffered']
    #allocation5 [shape = 's32[1]{0}', space=sflag, size = 0x4, scoped, tag = 'scoped memory for dice_loss.1']
    %7 = vsyncpa [#allocation3], 0
    %8 = vsyncpa [#allocation5], 0
    // Predicated region
    $region2: #{dice_loss.1} parent=1 // pred_check
      _
    $region3: #{dice_loss.1} parent=1 // pred_check_branch
      %10 = sbr.rel (0) target = $region5
    $region4: #{dice_loss.1} parent=1 // pred_region
      %s12 = ssub.s32 2048, 2048
      %13 = vsyncadd [#allocation3], %s12
      %s14 = sshll.u32 [#allocation2], 4
      %s15 = int_to_ptr.vmem [resolvable:$true] %s14
      %20 = dma.hbm_to_vmem [thread:$0]  %s0, 2048, %s15, [#allocation3], 128, 128, 8
    $region5: #{dice_loss.1} parent=1 // pred_fallthru
      _
    // Predicated region
    $region6: #{dice_loss.1} parent=1 // pred_check
      _
    $region7: #{dice_loss.1} parent=1 // pred_check_branch
      %22 = sbr.rel (0) target = $region9
    $region8: #{dice_loss.1} parent=1 // pred_region
      %s24 = ssub.s32 512, 512
      %25 = vsyncadd [#allocation5], %s24
      %s26 = sshll.u32 [#allocation4], 4
      %s27 = int_to_ptr.vmem [resolvable:$true] %s26
      %32 = dma.hbm_to_vmem [thread:$0]  %s1, 512, %s27, [#allocation5], 128, 128, 8
    $region9: #{dice_loss.1} parent=1 // pred_fallthru
      _
    // Predicated region
    $region10: #{dice_loss.1} parent=1 // pred_check
      _
    $region11: #{dice_loss.1} parent=1 // pred_check_branch
      %34 = sbr.rel (0) target = $region13
    $region12: #{dice_loss.1} parent=1 // pred_region
      %35 = dma.done [#allocation3], 2048
    $region13: #{dice_loss.1} parent=1 // pred_fallthru
      _
    // Predicated region
    $region14: #{dice_loss.1} parent=1 // pred_check
      _
    $region15: #{dice_loss.1} parent=1 // pred_check_branch
      %37 = sbr.rel (0) target = $region17
    $region16: #{dice_loss.1} parent=1 // pred_region
      %38 = dma.done [#allocation5], 512
    $region17: #{dice_loss.1} parent=1 // pred_fallthru
      _
    %v39 = vld [vmem:[#allocation4] sm:$0xff]
    %v40 = vld [vmem:[#allocation4 + $0x8] sm:$0xff]
    %v41 = vld [vmem:[#allocation4 + $0x10] sm:$0xff]
    %v42 = vld [vmem:[#allocation4 + $0x18] sm:$0xff]
    %v43 = vlaneseq
    %v44 = vshrl.u32 %v43, 7
    %v45 = vlaneseq
    %v46 = vand.u32 %v45, 127
    %v47 = vld [vmem:[#allocation2] sm:$0xff]
    %v48 = vld [vmem:[#allocation2 + $0x8] sm:$0xff]
    %v49 = vld [vmem:[#allocation2 + $0x40] sm:$0xff]
    %v50 = vld [vmem:[#allocation2 + $0x48] sm:$0xff]
    %vm51 = vcmp.eq.s32.totalorder %v39, 0
    %vm52 = vcmp.eq.s32.totalorder %v40, 0
    %vm53 = vcmp.eq.s32.totalorder %v41, 0
    %vm54 = vcmp.eq.s32.totalorder %v42, 0
    %v55 = vsel %vm51, %v47, 0.0
    %v56 = vsel %vm52, %v48, 0.0
    %v57 = vsel %vm53, %v49, 0.0
    %v58 = vsel %vm54, %v50, 0.0
    %vm59 = vcmask 130048
    %v60 = vsel %vm59, %v55, 0.0
    %v61 = vsel %vm59, %v56, 0.0
    %v62 = vadd.f32 %v60, %v61
    %v63 = vsel %vm59, %v57, 0.0
    %v64 = vadd.f32 %v62, %v63
    %v65 = vsel %vm59, %v58, 0.0
    %v66 = vadd.f32 %v64, %v65
    %67 = vadd.xlane.f32.xlu0 %v66
    %v68 = vpop.xlane.xlu0 %67
    %v69 = vrot.slane %v68, 4
    %v70 = vadd.f32 %v68, %v69
    %v71 = vrot.slane %v70, 2
    %v72 = vadd.f32 %v70, %v71
    %v73 = vrot.slane %v72, 1
    %v74 = vadd.f32 %v72, %v73
    %s75 = vtos %v74
    %v76 = vsel %vm51, 1, 0
    %v77 = vsel %vm52, 1, 0
    %v78 = vsel %vm53, 1, 0
    %v79 = vsel %vm54, 1, 0
    %v80 = vcvt.s32.f32 %v76
    %v81 = vcvt.s32.f32 %v77
    %v82 = vcvt.s32.f32 %v78
    %v83 = vcvt.s32.f32 %v79
    %v84 = vsel %vm59, %v80, 0.0
    %v85 = vsel %vm59, %v81, 0.0
    %v86 = vadd.f32 %v84, %v85
    %v87 = vsel %vm59, %v82, 0.0
    %v88 = vadd.f32 %v86, %v87
    %v89 = vsel %vm59, %v83, 0.0
    %v90 = vadd.f32 %v88, %v89
    %91 = vadd.xlane.f32.xlu0 %v90
    %v92 = vpop.xlane.xlu0 %91
    %v93 = vrot.slane %v92, 4
    %v94 = vadd.f32 %v92, %v93
    %v95 = vrot.slane %v94, 2
    %v96 = vadd.f32 %v94, %v95
    %v97 = vrot.slane %v96, 1
    %v98 = vadd.f32 %v96, %v97
    %s99 = vtos %v98
    %v100 = vmul.f32 %v47, %v47
    %v101 = vmul.f32 %v48, %v48
    %v102 = vmul.f32 %v49, %v49
    %v103 = vmul.f32 %v50, %v50
    %v104 = vsel %vm59, %v100, 0.0
    %v105 = vsel %vm59, %v101, 0.0
    %v106 = vadd.f32 %v104, %v105
    %v107 = vsel %vm59, %v102, 0.0
    %v108 = vadd.f32 %v106, %v107
    %v109 = vsel %vm59, %v103, 0.0
    %v110 = vadd.f32 %v108, %v109
    %111 = vadd.xlane.f32.xlu0 %v110
    %v112 = vpop.xlane.xlu0 %111
    %v113 = vrot.slane %v112, 4
    %v114 = vadd.f32 %v112, %v113
    %v115 = vrot.slane %v114, 2
    %v116 = vadd.f32 %v114, %v115
    %v117 = vrot.slane %v116, 1
    %v118 = vadd.f32 %v116, %v117
    %s119 = vtos %v118
    %vm120 = vcmp.eq.s32.totalorder %v46, 0
    %vm121 = vcmp.eq.s32.totalorder %v44, 0
    %vm122 = vmand %vm121, %vm120
    %v123 = vstv %s75
    %v124 = vsel %vm122, %v123, 0.0
    %v125 = vadd.f32 %v124, 0.0
    %vm126 = vcmp.eq.s32.totalorder %v44, 1
    %vm127 = vmand %vm126, %vm120
    %v128 = vstv %s99
    %v129 = vsel %vm127, %v128, 0.0
    %v130 = vadd.f32 %v125, %v129
    %vm131 = vcmp.eq.s32.totalorder %v44, 2
    %vm132 = vmand %vm131, %vm120
    %v133 = vstv %s119
    %v134 = vsel %vm132, %v133, 0.0
    %v135 = vadd.f32 %v130, %v134
    %s136 = scalar_lea.vmem [#allocation2], 16
    %v137 = vld [vmem:[%s136] sm:$0xff]
    %v138 = vld [vmem:[%s136 + $0x8] sm:$0xff]
    %v139 = vld [vmem:[%s136 + $0x40] sm:$0xff]
    %v140 = vld [vmem:[%s136 + $0x48] sm:$0xff]
    %vm141 = vcmp.eq.s32.totalorder %v39, 1
    %vm142 = vcmp.eq.s32.totalorder %v40, 1
    %vm143 = vcmp.eq.s32.totalorder %v41, 1
    %vm144 = vcmp.eq.s32.totalorder %v42, 1
    %v145 = vsel %vm141, %v137, 0.0
    %v146 = vsel %vm142, %v138, 0.0
    %v147 = vsel %vm143, %v139, 0.0
    %v148 = vsel %vm144, %v140, 0.0
    %v149 = vsel %vm59, %v145, 0.0
    %v150 = vsel %vm59, %v146, 0.0
    %v151 = vadd.f32 %v149, %v150
    %v152 = vsel %vm59, %v147, 0.0
    %v153 = vadd.f32 %v151, %v152
    %v154 = vsel %vm59, %v148, 0.0
    %v155 = vadd.f32 %v153, %v154
    %156 = vadd.xlane.f32.xlu0 %v155
    %v157 = vpop.xlane.xlu0 %156
    %v158 = vrot.slane %v157, 4
    %v159 = vadd.f32 %v157, %v158
    %v160 = vrot.slane %v159, 2
    %v161 = vadd.f32 %v159, %v160
    %v162 = vrot.slane %v161, 1
    %v163 = vadd.f32 %v161, %v162
    %s164 = vtos %v163
    %v165 = vsel %vm141, 1, 0
    %v166 = vsel %vm142, 1, 0
    %v167 = vsel %vm143, 1, 0
    %v168 = vsel %vm144, 1, 0
    %v169 = vcvt.s32.f32 %v165
    %v170 = vcvt.s32.f32 %v166
    %v171 = vcvt.s32.f32 %v167
    %v172 = vcvt.s32.f32 %v168
    %v173 = vsel %vm59, %v169, 0.0
    %v174 = vsel %vm59, %v170, 0.0
    %v175 = vadd.f32 %v173, %v174
    %v176 = vsel %vm59, %v171, 0.0
    %v177 = vadd.f32 %v175, %v176
    %v178 = vsel %vm59, %v172, 0.0
    %v179 = vadd.f32 %v177, %v178
    %180 = vadd.xlane.f32.xlu0 %v179
    %v181 = vpop.xlane.xlu0 %180
    %v182 = vrot.slane %v181, 4
    %v183 = vadd.f32 %v181, %v182
    %v184 = vrot.slane %v183, 2
    %v185 = vadd.f32 %v183, %v184
    %v186 = vrot.slane %v185, 1
    %v187 = vadd.f32 %v185, %v186
    %s188 = vtos %v187
    %v189 = vmul.f32 %v137, %v137
    %v190 = vmul.f32 %v138, %v138
    %v191 = vmul.f32 %v139, %v139
    %v192 = vmul.f32 %v140, %v140
    %v193 = vsel %vm59, %v189, 0.0
    %v194 = vsel %vm59, %v190, 0.0
    %v195 = vadd.f32 %v193, %v194
    %v196 = vsel %vm59, %v191, 0.0
    %v197 = vadd.f32 %v195, %v196
    %v198 = vsel %vm59, %v192, 0.0
    %v199 = vadd.f32 %v197, %v198
    %200 = vadd.xlane.f32.xlu0 %v199
    %v201 = vpop.xlane.xlu0 %200
    %v202 = vrot.slane %v201, 4
    %v203 = vadd.f32 %v201, %v202
    %v204 = vrot.slane %v203, 2
    %v205 = vadd.f32 %v203, %v204
    %v206 = vrot.slane %v205, 1
    %v207 = vadd.f32 %v205, %v206
    %s208 = vtos %v207
    %vm209 = vcmp.eq.s32.totalorder %v46, 1
    %vm210 = vmand %vm121, %vm209
    %v211 = vstv %s164
    %v212 = vsel %vm210, %v211, 0.0
    %v213 = vadd.f32 %v135, %v212
    %vm214 = vmand %vm126, %vm209
    %v215 = vstv %s188
    %v216 = vsel %vm214, %v215, 0.0
    %v217 = vadd.f32 %v213, %v216
    %vm218 = vmand %vm131, %vm209
    %v219 = vstv %s208
    %v220 = vsel %vm218, %v219, 0.0
    %v221 = vadd.f32 %v217, %v220
    %s222 = scalar_lea.vmem [#allocation2], 32
    %v223 = vld [vmem:[%s222] sm:$0xff]
    %v224 = vld [vmem:[%s222 + $0x8] sm:$0xff]
    %v225 = vld [vmem:[%s222 + $0x40] sm:$0xff]
    %v226 = vld [vmem:[%s222 + $0x48] sm:$0xff]
    %vm227 = vcmp.eq.s32.totalorder %v39, 2
    %vm228 = vcmp.eq.s32.totalorder %v40, 2
    %vm229 = vcmp.eq.s32.totalorder %v41, 2
    %vm230 = vcmp.eq.s32.totalorder %v42, 2
    %v231 = vsel %vm227, %v223, 0.0
    %v232 = vsel %vm228, %v224, 0.0
    %v233 = vsel %vm229, %v225, 0.0
    %v234 = vsel %vm230, %v226, 0.0
    %v235 = vsel %vm59, %v231, 0.0
    %v236 = vsel %vm59, %v232, 0.0
    %v237 = vadd.f32 %v235, %v236
    %v238 = vsel %vm59, %v233, 0.0
    %v239 = vadd.f32 %v237, %v238
    %v240 = vsel %vm59, %v234, 0.0
    %v241 = vadd.f32 %v239, %v240
    %242 = vadd.xlane.f32.xlu0 %v241
    %v243 = vpop.xlane.xlu0 %242
    %v244 = vrot.slane %v243, 4
    %v245 = vadd.f32 %v243, %v244
    %v246 = vrot.slane %v245, 2
    %v247 = vadd.f32 %v245, %v246
    %v248 = vrot.slane %v247, 1
    %v249 = vadd.f32 %v247, %v248
    %s250 = vtos %v249
    %v251 = vsel %vm227, 1, 0
    %v252 = vsel %vm228, 1, 0
    %v253 = vsel %vm229, 1, 0
    %v254 = vsel %vm230, 1, 0
    %v255 = vcvt.s32.f32 %v251
    %v256 = vcvt.s32.f32 %v252
    %v257 = vcvt.s32.f32 %v253
    %v258 = vcvt.s32.f32 %v254
    %v259 = vsel %vm59, %v255, 0.0
    %v260 = vsel %vm59, %v256, 0.0
    %v261 = vadd.f32 %v259, %v260
    %v262 = vsel %vm59, %v257, 0.0
    %v263 = vadd.f32 %v261, %v262
    %v264 = vsel %vm59, %v258, 0.0
    %v265 = vadd.f32 %v263, %v264
    %266 = vadd.xlane.f32.xlu0 %v265
    %v267 = vpop.xlane.xlu0 %266
    %v268 = vrot.slane %v267, 4
    %v269 = vadd.f32 %v267, %v268
    %v270 = vrot.slane %v269, 2
    %v271 = vadd.f32 %v269, %v270
    %v272 = vrot.slane %v271, 1
    %v273 = vadd.f32 %v271, %v272
    %s274 = vtos %v273
    %v275 = vmul.f32 %v223, %v223
    %v276 = vmul.f32 %v224, %v224
    %v277 = vmul.f32 %v225, %v225
    %v278 = vmul.f32 %v226, %v226
    %v279 = vsel %vm59, %v275, 0.0
    %v280 = vsel %vm59, %v276, 0.0
    %v281 = vadd.f32 %v279, %v280
    %v282 = vsel %vm59, %v277, 0.0
    %v283 = vadd.f32 %v281, %v282
    %v284 = vsel %vm59, %v278, 0.0
    %v285 = vadd.f32 %v283, %v284
    %286 = vadd.xlane.f32.xlu0 %v285
    %v287 = vpop.xlane.xlu0 %286
    %v288 = vrot.slane %v287, 4
    %v289 = vadd.f32 %v287, %v288
    %v290 = vrot.slane %v289, 2
    %v291 = vadd.f32 %v289, %v290
    %v292 = vrot.slane %v291, 1
    %v293 = vadd.f32 %v291, %v292
    %s294 = vtos %v293
    %vm295 = vcmp.eq.s32.totalorder %v46, 2
    %vm296 = vmand %vm121, %vm295
    %v297 = vstv %s250
    %v298 = vsel %vm296, %v297, 0.0
    %v299 = vadd.f32 %v221, %v298
    %vm300 = vmand %vm126, %vm295
    %v301 = vstv %s274
    %v302 = vsel %vm300, %v301, 0.0
    %v303 = vadd.f32 %v299, %v302
    %vm304 = vmand %vm131, %vm295
    %v305 = vstv %s294
    %v306 = vsel %vm304, %v305, 0.0
    %v307 = vadd.f32 %v303, %v306
    %s308 = scalar_lea.vmem [#allocation2], 48
    %v309 = vld [vmem:[%s308] sm:$0xff]
    %v310 = vld [vmem:[%s308 + $0x8] sm:$0xff]
    %v311 = vld [vmem:[%s308 + $0x40] sm:$0xff]
    %v312 = vld [vmem:[%s308 + $0x48] sm:$0xff]
    %vm313 = vcmp.eq.s32.totalorder %v39, 3
    %vm314 = vcmp.eq.s32.totalorder %v40, 3
    %vm315 = vcmp.eq.s32.totalorder %v41, 3
    %vm316 = vcmp.eq.s32.totalorder %v42, 3
    %v317 = vsel %vm313, %v309, 0.0
    %v318 = vsel %vm314, %v310, 0.0
    %v319 = vsel %vm315, %v311, 0.0
    %v320 = vsel %vm316, %v312, 0.0
    %v321 = vsel %vm59, %v317, 0.0
    %v322 = vsel %vm59, %v318, 0.0
    %v323 = vadd.f32 %v321, %v322
    %v324 = vsel %vm59, %v319, 0.0
    %v325 = vadd.f32 %v323, %v324
    %v326 = vsel %vm59, %v320, 0.0
    %v327 = vadd.f32 %v325, %v326
    %328 = vadd.xlane.f32.xlu0 %v327
    %v329 = vpop.xlane.xlu0 %328
    %v330 = vrot.slane %v329, 4
    %v331 = vadd.f32 %v329, %v330
    %v332 = vrot.slane %v331, 2
    %v333 = vadd.f32 %v331, %v332
    %v334 = vrot.slane %v333, 1
    %v335 = vadd.f32 %v333, %v334
    %s336 = vtos %v335
    %v337 = vsel %vm313, 1, 0
    %v338 = vsel %vm314, 1, 0
    %v339 = vsel %vm315, 1, 0
    %v340 = vsel %vm316, 1, 0
    %v341 = vcvt.s32.f32 %v337
    %v342 = vcvt.s32.f32 %v338
    %v343 = vcvt.s32.f32 %v339
    %v344 = vcvt.s32.f32 %v340
    %v345 = vsel %vm59, %v341, 0.0
    %v346 = vsel %vm59, %v342, 0.0
    %v347 = vadd.f32 %v345, %v346
    %v348 = vsel %vm59, %v343, 0.0
    %v349 = vadd.f32 %v347, %v348
    %v350 = vsel %vm59, %v344, 0.0
    %v351 = vadd.f32 %v349, %v350
    %352 = vadd.xlane.f32.xlu0 %v351
    %v353 = vpop.xlane.xlu0 %352
    %v354 = vrot.slane %v353, 4
    %v355 = vadd.f32 %v353, %v354
    %v356 = vrot.slane %v355, 2
    %v357 = vadd.f32 %v355, %v356
    %v358 = vrot.slane %v357, 1
    %v359 = vadd.f32 %v357, %v358
    %s360 = vtos %v359
    %v361 = vmul.f32 %v309, %v309
    %v362 = vmul.f32 %v310, %v310
    %v363 = vmul.f32 %v311, %v311
    %v364 = vmul.f32 %v312, %v312
    %v365 = vsel %vm59, %v361, 0.0
    %v366 = vsel %vm59, %v362, 0.0
    %v367 = vadd.f32 %v365, %v366
    %v368 = vsel %vm59, %v363, 0.0
    %v369 = vadd.f32 %v367, %v368
    %v370 = vsel %vm59, %v364, 0.0
    %v371 = vadd.f32 %v369, %v370
    %372 = vadd.xlane.f32.xlu0 %v371
    %v373 = vpop.xlane.xlu0 %372
    %v374 = vrot.slane %v373, 4
    %v375 = vadd.f32 %v373, %v374
    %v376 = vrot.slane %v375, 2
    %v377 = vadd.f32 %v375, %v376
    %v378 = vrot.slane %v377, 1
    %v379 = vadd.f32 %v377, %v378
    %s380 = vtos %v379
    %vm381 = vcmp.eq.s32.totalorder %v46, 3
    %vm382 = vmand %vm121, %vm381
    %v383 = vstv %s336
    %v384 = vsel %vm382, %v383, 0.0
    %v385 = vadd.f32 %v307, %v384
    %vm386 = vmand %vm126, %vm381
    %v387 = vstv %s360
    %v388 = vsel %vm386, %v387, 0.0
    %v389 = vadd.f32 %v385, %v388
    %vm390 = vmand %vm131, %vm381
    %v391 = vstv %s380
    %v392 = vsel %vm390, %v391, 0.0
    %v393 = vadd.f32 %v389, %v392
    %394 = vst [vmem:[%s2] sm:$0xff] %v393
    // Predicated region
    $region18: #{dice_loss.1} parent=1 // pred_check
      _
    $region19: #{dice_loss.1} parent=1 // pred_check_branch
      %396 = sbr.rel (0) target = $region21
    $region20: #{dice_loss.1} parent=1 // pred_region
      _
    $region21: #{dice_loss.1} parent=1 // pred_fallthru
      _
    // Predicated region
    $region22: #{dice_loss.1} parent=1 // pred_check
      _
    $region23: #{dice_loss.1} parent=1 // pred_check_branch
      %398 = sbr.rel (0) target = $region25
    $region24: #{dice_loss.1} parent=1 // pred_region
      _
    $region25: #{dice_loss.1} parent=1 // pred_fallthru
      _
    %399 = vsyncpa [#allocation3], 1
    %400 = vsyncpa [#allocation5], 1

</llo_original>
